<compile_context>
chip_gen: v5e
topology: v5e:2x2
jax: 0.10.0
libtpu: 0.0.40
codegen_flags: <defaults>
</compile_context>

<pallas_src>
import functools
import math

import jax
import jax.numpy as jnp
from jax.experimental import pallas as pl
from jax.experimental.pallas import tpu as pltpu


def _build_pe(d_model: int, max_len: int = 5000, dtype=jnp.float32) -> jnp.ndarray:
    """Sinusoidal positional-encoding buffer, shape (max_len, 1, d_model)."""
    position = jnp.arange(max_len, dtype=jnp.float32)[:, None]                  # (max_len, 1)
    div_term = jnp.exp(
        jnp.arange(0, d_model, 2, dtype=jnp.float32) * (-math.log(10000.0) / d_model)
    )                                                                            # (ceil(d/2),)
    angles = position * div_term                                                 # (max_len, ceil(d/2))
    pe = jnp.zeros((max_len, d_model), dtype=jnp.float32)
    pe = pe.at[:, 0::2].set(jnp.sin(angles))
    # Slice cos columns so odd d_model doesn't shape-error (latent bug in the
    # PyTorch original, which would raise for odd d_model).
    pe = pe.at[:, 1::2].set(jnp.cos(angles)[:, : d_model // 2])
    return pe[:, None, :].astype(dtype)                                          # (max_len, 1, d_model)


def _pe_add_kernel(x_ref, pe_ref, o_ref, *, batch: int):
    # x_ref / o_ref: (seq_tile, B*D) lane-dense tiles; pe_ref: (seq_tile, D).
    # Per-tile cast (if pe dtype differs from x dtype) is free VPU work hidden
    # under the DMA-bound stream; jnp.tile replicates pe across the B batches
    # laid out contiguously along the lane axis.
    pe_tile = pe_ref[...].astype(o_ref.dtype)
    o_ref[...] = x_ref[...] + jnp.tile(pe_tile, (1, batch))


def _tile_budget_bytes() -> int:
    """Target double-buffered VMEM footprint for the (x, out, pe) tile set."""
    try:
        kind = jax.devices()[0].device_kind.lower()
    except Exception:
        return 12 << 20
    if "v5 lite" in kind or "v5e" in kind or "v5lite" in kind:
        return 12 << 20          # stay under v5e's 16 MiB default scoped VMEM
    return 24 << 20              # v6e / v7x: 32 MiB default scoped VMEM


def positional_encoding(x: jnp.ndarray, pe: jnp.ndarray, seq_tile: int | None = None) -> jnp.ndarray:
    """x: (seq, batch, d_model); pe: (max_len, 1, d_model). Returns x + pe[:seq]."""
    S, B, D = x.shape
    assert pe.ndim == 3 and pe.shape[0] >= S and pe.shape[1] == 1 and pe.shape[2] == D

    x_item = jnp.dtype(x.dtype).itemsize
    pe_item = jnp.dtype(pe.dtype).itemsize

    # Lane-dense views. Trailing dims are contiguous, so these are free
    # metadata reshapes (no HBM copy), as is the reshape back at the end.
    x2d = x.reshape(S, B * D)
    pe2d = pe.reshape(pe.shape[0], D)

    # Double-buffered VMEM bytes per sequence row: x tile + out tile (+ pe tile).
    row_bytes = 2 * (2 * B * D * x_item + D * pe_item)
    if seq_tile is None:
        seq_tile = max(8, (_tile_budget_bytes() // row_bytes) // 8 * 8)
    if seq_tile >= S:
        # Single block: slice pe so both blocks span their full first dim, which
        # keeps the (8, 128) block-shape rule satisfied for any small/odd S.
        seq_tile = S
        pe2d = pe2d[:S]
    else:
        # Multi-block: keep the second-to-last block dim a multiple of 8.
        seq_tile = max(8, (seq_tile // 8) * 8)

    grid = (pl.cdiv(S, seq_tile),)
    vmem_need = seq_tile * row_bytes

    params = dict(dimension_semantics=("parallel",))
    if vmem_need > (12 << 20):
        # Cover the footprint explicitly; safe on every generation
        # (physical VMEM is >= 64 MiB per TensorCore on v5e/v6e/v7x).
        params["vmem_limit_bytes"] = int(max(32 << 20, min(vmem_need + (8 << 20), 128 << 20)))

    cost = pl.CostEstimate(
        flops=S * B * D,
        transcendentals=0,
        bytes_accessed=2 * S * B * D * x_item + S * D * pe_item,
    )

    out2d = pl.pallas_call(
        functools.partial(_pe_add_kernel, batch=B),
        out_shape=jax.ShapeDtypeStruct((S, B * D), x.dtype),
        grid_spec=pltpu.PrefetchScalarGridSpec(
            num_scalar_prefetch=0,
            grid=grid,
            in_specs=[
                pl.BlockSpec((seq_tile, B * D), lambda i: (i, 0)),
                # Full pe buffer streamed directly; index_map only ever touches
                # the first ceil(S / seq_tile) blocks — no wrapper-side convert
                # or copy of the whole max_len buffer.
                pl.BlockSpec((seq_tile, D), lambda i: (i, 0)),
            ],
            out_specs=pl.BlockSpec((seq_tile, B * D), lambda i: (i, 0)),
        ),
        compiler_params=pltpu.CompilerParams(**params),
        cost_estimate=cost,
    )(x2d, pe2d)

    return out2d.reshape(S, B, D)


if __name__ == "__main__":
    # Shapes consistent with the module's forward: (seq, batch, d_model).
    seq_len, batch, d_model = 8, 2, 32
    max_len = 64  # semantics identical to max_len=5000 for seq_len <= 64

    key = jax.random.PRNGKey(0)
    x = jax.random.normal(key, (seq_len, batch, d_model), dtype=jnp.float32)
    pe = _build_pe(d_model, max_len=max_len, dtype=x.dtype)

    out = jax.block_until_ready(positional_encoding(x, pe))
    ref = x + pe[:seq_len]
    assert out.shape == x.shape
    assert jnp.allclose(out, ref, atol=1e-6, rtol=1e-6), "mismatch vs reference"

    # Second check: exercises the cdiv grid / ragged last block and the
    # pipelined multi-step path (S = 36 with seq_tile = 16 -> blocks 16,16,4).
    key2 = jax.random.PRNGKey(1)
    x2 = jax.random.normal(key2, (36, 2, 32), dtype=jnp.float32)
    out2 = jax.block_until_ready(positional_encoding(x2, pe, seq_tile=16))
    ref2 = x2 + pe[:36]
    assert jnp.allclose(out2, ref2, atol=1e-6, rtol=1e-6), "mismatch vs reference (ragged grid)"

    print("KERNEL_OK")
</pallas_src>

<mosaic_0001>
module attributes {stable_mosaic.version = 11 : i64} {
  func.func @_pe_add_kernel(%arg0: i32, %arg1: memref<8x64xf32, #tpu.memory_space<vmem>>, %arg2: memref<8x32xf32, #tpu.memory_space<vmem>>, %arg3: memref<8x64xf32, #tpu.memory_space<vmem>>) attributes {dimension_semantics = [#tpu.dimension_semantics<parallel>], iteration_bounds = array<i64: 1>, scalar_prefetch = 0 : i64, scratch_operands = 0 : i64, tpu.core_type = #tpu.core_type<tc>, window_params = [{transform_indices = @transform_0, window_bounds = array<i64: 8, 64>}, {transform_indices = @transform_1, window_bounds = array<i64: 8, 32>}, {transform_indices = @transform_2, window_bounds = array<i64: 8, 64>}]} {
    %c0 = arith.constant 0 : index
    %c0_0 = arith.constant 0 : index
    %0 = vector.load %arg2[%c0, %c0_0] : memref<8x32xf32, #tpu.memory_space<vmem>>, vector<8x32xf32>
    %c0_1 = arith.constant 0 : index
    %c0_2 = arith.constant 0 : index
    %1 = vector.load %arg1[%c0_1, %c0_2] : memref<8x64xf32, #tpu.memory_space<vmem>>, vector<8x64xf32>
    %2 = tpu.concatenate %0, %0 in 1 : vector<8x32xf32>, vector<8x32xf32> -> vector<8x64xf32>
    %3 = arith.addf %1, %2 : vector<8x64xf32>
    %c0_3 = arith.constant 0 : index
    %c0_4 = arith.constant 0 : index
    %4 = vector.load %arg3[%c0_3, %c0_4] : memref<8x64xf32, #tpu.memory_space<vmem>>, vector<8x64xf32>
    tpu.vector_store %arg3[%c0_3, %c0_4], %3 {strides = array<i32>} : memref<8x64xf32, #tpu.memory_space<vmem>>, vector<8x64xf32>,
    return
  }
  func.func @transform_0(%arg0: i32) -> (i32, i32) {
    %c0_i32 = arith.constant 0 : i32
    %c0_i32_0 = arith.constant 0 : i32
    return %arg0, %c0_i32 : i32, i32
  }
  func.func @transform_1(%arg0: i32) -> (i32, i32) {
    %c0_i32 = arith.constant 0 : i32
    %c0_i32_0 = arith.constant 0 : i32
    return %arg0, %c0_i32 : i32, i32
  }
  func.func @transform_2(%arg0: i32) -> (i32, i32) {
    %c0_i32 = arith.constant 0 : i32
    %c0_i32_0 = arith.constant 0 : i32
    return %arg0, %c0_i32 : i32, i32
  }
}

</mosaic_0001>

<llo_original>
// kernel: tpu_custom_call.1
$region0: #{tpu_custom_call.1}
  #allocation0 [shape = 'u32[]', space=smem, size = 0x4, offset = 0x4, fixed_abs, tag = 'smem constant byte address 0x4 - core index']
  #allocation1 [shape = 'u32[72,128]{1,0:T(1,128)}', space=vmem, size = 0x9000, scoped, tag = 'internal scratch']
  %s0 = inlined_call_operand.hbm [shape: f32[8,64], index: 0, kind: input, shape index: {}]
  %s1 = inlined_call_operand.hbm [shape: f32[8,32], index: 1, kind: input, shape index: {}]
  %s2 = inlined_call_operand.hbm [shape: f32[8,64], index: 2, kind: output, shape index: {}]
  %s3 = sld [smem:[#allocation0]]
  $region26: #{tpu_custom_call.1} parent=0
    _
  %s5 = ssub.s32 1, %s3
  %s6 = scalar_select 0, %s5, %s3
  $region1: #{tpu_custom_call.1} parent=0
    #allocation2 [shape = 'u8[4096]{0}', space=vmem, size = 0x1000, scoped, tag = 'input window, operand 0, single buffered']
    #allocation3 [shape = 's32[1]{0}', space=sflag, size = 0x4, scoped, tag = 'scoped memory for tpu_custom_call.1']
    #allocation4 [shape = 's32[1]{0}', space=sflag, size = 0x4, scoped, tag = 'scoped memory for tpu_custom_call.1']
    #allocation5 [shape = 'u8[4096]{0}', space=vmem, size = 0x1000, scoped, tag = 'input window, operand 1, single buffered']
    #allocation6 [shape = 's32[1]{0}', space=sflag, size = 0x4, scoped, tag = 'scoped memory for tpu_custom_call.1']
    #allocation7 [shape = 'u8[4096]{0}', space=vmem, size = 0x1000, scoped, tag = 'output window, operand 0, single buffered']
    %7 = vsyncpa [#allocation3], 0
    %8 = vsyncpa [#allocation6], 0
    %9 = vsyncpa [#allocation4], 0
    // Predicated region
    $region2: #{tpu_custom_call.1} parent=1 // pred_check
      _
    $region3: #{tpu_custom_call.1} parent=1 // pred_check_branch
      %11 = sbr.rel (0) target = $region5
    $region4: #{tpu_custom_call.1} parent=1 // pred_region
      %13 = vsyncadd [#allocation3], 0
      %s15 = sshll.u32 %s0, 4
      %s16 = int_to_ptr.hbm [resolvable:$true] %s15
      %s17 = sshll.u32 [#allocation2], 4
      %s18 = int_to_ptr.vmem [resolvable:$true] %s17
      %20 = dma.hbm_to_vmem [thread:$0]  %s16, 128, %s18, [#allocation3]
    $region5: #{tpu_custom_call.1} parent=1 // pred_fallthru
      _
    // Predicated region
    $region6: #{tpu_custom_call.1} parent=1 // pred_check
      _
    $region7: #{tpu_custom_call.1} parent=1 // pred_check_branch
      %22 = sbr.rel (0) target = $region9
    $region8: #{tpu_custom_call.1} parent=1 // pred_region
      %24 = vsyncadd [#allocation6], 0
      %s26 = sshll.u32 %s1, 4
      %s27 = int_to_ptr.hbm [resolvable:$true] %s26
      %s28 = sshll.u32 [#allocation5], 4
      %s29 = int_to_ptr.vmem [resolvable:$true] %s28
      %31 = dma.hbm_to_vmem [thread:$0]  %s27, 128, %s29, [#allocation6]
    $region9: #{tpu_custom_call.1} parent=1 // pred_fallthru
      _
    // Predicated region
    $region10: #{tpu_custom_call.1} parent=1 // pred_check
      _
    $region11: #{tpu_custom_call.1} parent=1 // pred_check_branch
      %33 = sbr.rel (0) target = $region13
    $region12: #{tpu_custom_call.1} parent=1 // pred_region
      %35 = dma.done [#allocation3], 128
    $region13: #{tpu_custom_call.1} parent=1 // pred_fallthru
      _
    // Predicated region
    $region14: #{tpu_custom_call.1} parent=1 // pred_check
      _
    $region15: #{tpu_custom_call.1} parent=1 // pred_check_branch
      %37 = sbr.rel (0) target = $region17
    $region16: #{tpu_custom_call.1} parent=1 // pred_region
      %39 = dma.done [#allocation6], 128
    $region17: #{tpu_custom_call.1} parent=1 // pred_fallthru
      _
    %v40 = vld [vmem:[#allocation5] sm:$0xff]
    %v41 = vld [vmem:[#allocation2] sm:$0xff]
    %43 = vrot.lane.b32.xlu0 %v40, 32
    %v44 = vpop.permute.xlu0 %43
    %vm46 = vcmask 261120
    %v47 = vsel %vm46, %v40, %v44
    %v48 = vadd.f32 %v41, %v47
    %vm49 = vcmask 523264
    %50 = vst.msk [vmem:[#allocation7] sm:$0xff] %vm49, %v48
    // Predicated region
    $region18: #{tpu_custom_call.1} parent=1 // pred_check
      _
    $region19: #{tpu_custom_call.1} parent=1 // pred_check_branch
      %52 = sbr.rel (0) target = $region21
    $region20: #{tpu_custom_call.1} parent=1 // pred_region
      %54 = vsyncadd [#allocation4], 0
      %s56 = sshll.u32 [#allocation7], 4
      %s57 = int_to_ptr.vmem [resolvable:$true] %s56
      %s58 = sshll.u32 %s2, 4
      %s59 = int_to_ptr.hbm [resolvable:$true] %s58
      %61 = dma.vmem_to_hbm [thread:$0]  %s57, 128, %s59, [#allocation4]
    $region21: #{tpu_custom_call.1} parent=1 // pred_fallthru
      _
    // Predicated region
    $region22: #{tpu_custom_call.1} parent=1 // pred_check
      _
    $region23: #{tpu_custom_call.1} parent=1 // pred_check_branch
      %63 = sbr.rel (0) target = $region25
    $region24: #{tpu_custom_call.1} parent=1 // pred_region
      %65 = dma.done [#allocation4], 128
    $region25: #{tpu_custom_call.1} parent=1 // pred_fallthru
      _
    %66 = vsyncpa [#allocation3], 1
    %67 = vsyncpa [#allocation6], 1
    %68 = vsyncpa [#allocation4], 1

</llo_original>
